<compile_context>
chip_gen: v5e
topology: v5e:2x2
jax: 0.10.0
libtpu: 0.0.40
codegen_flags: <defaults>
</compile_context>

<pallas_src>
import functools

import jax
import jax.numpy as jnp
from jax.experimental import pallas as pl
from jax.experimental.pallas import tpu as pltpu


def _round_up(x, m):
    return (x + m - 1) // m * m


def _mlp_kernel(x_ref, w1_ref, b1_ref, w2_ref, b2_ref, w3_ref, b3_ref, o_ref):
    # Inputs arrive f32; cast matmul operands to bf16 in-kernel, accumulate f32.
    x = x_ref[...].astype(jnp.bfloat16)                                   # (TB, D_in)

    # fc1 + ReLU
    h1 = jnp.dot(x, w1_ref[...].astype(jnp.bfloat16),
                 preferred_element_type=jnp.float32)                      # (TB, 128)
    h1 = jnp.maximum(h1 + b1_ref[...], 0.0)

    # fc2 + ReLU
    h2 = jnp.dot(h1.astype(jnp.bfloat16), w2_ref[...].astype(jnp.bfloat16),
                 preferred_element_type=jnp.float32)                      # (TB, 128)
    h2 = jnp.maximum(h2 + b2_ref[...], 0.0)

    # fc3 + Sigmoid (unpadded d_out -> tiny masked store, minimal HBM writeback)
    z = jnp.dot(h2.astype(jnp.bfloat16), w3_ref[...].astype(jnp.bfloat16),
                preferred_element_type=jnp.float32) + b3_ref[...]         # (TB, d_out)
    sig = pl.reciprocal(1.0 + jnp.exp(-z), approx=True)                   # EUP exp + rcp
    o_ref[...] = sig.astype(o_ref.dtype)


def _choose_block_b(batch, target):
    """Batch tile: as large as possible (amortize ~0.35us/grid-step), but keep
    >=2 grid steps when the batch allows so both v7x TensorCores get work along
    the 'parallel' batch axis.  VMEM is never the constraint here."""
    bb = min(target, _round_up(batch, 8))
    if batch >= 16:
        bb = min(bb, _round_up(pl.cdiv(batch, 2), 8))
    return max(8, bb)


@functools.partial(jax.jit, static_argnames=("block_b", "out_dtype"))
def nn_drought_stress_forward(x, w1, b1, w2, b2, w3, b3, *,
                              block_b=2048, out_dtype=jnp.float32):
    """x: (B, input_size) f32; weights w_i: (in, out) f32; biases b_i: (1, out) f32.
    out_dtype=jnp.bfloat16 halves the remaining output HBM traffic if tolerable."""
    B, d_in = x.shape
    hidden = w1.shape[1]
    d_out = w3.shape[1]

    bb = _choose_block_b(B, block_b)
    grid = (pl.cdiv(B, bb),)   # partial last block handled by Pallas (no jnp.pad)

    flops = 2 * B * (d_in * hidden + hidden * hidden + hidden * d_out)
    bytes_accessed = (
        4 * x.size
        + 4 * (w1.size + w2.size + w3.size + b1.size + b2.size + b3.size)
        + jnp.dtype(out_dtype).itemsize * B * d_out
    )

    return pl.pallas_call(
        _mlp_kernel,
        out_shape=jax.ShapeDtypeStruct((B, d_out), out_dtype),
        grid_spec=pltpu.PrefetchScalarGridSpec(
            num_scalar_prefetch=0,
            grid=grid,
            in_specs=[
                pl.BlockSpec((bb, d_in), lambda i: (i, 0)),        # x tile (f32)
                pl.BlockSpec((d_in, hidden), lambda i: (0, 0)),    # w1 (VMEM resident)
                pl.BlockSpec((1, hidden), lambda i: (0, 0)),       # b1
                pl.BlockSpec((hidden, hidden), lambda i: (0, 0)),  # w2 (VMEM resident)
                pl.BlockSpec((1, hidden), lambda i: (0, 0)),       # b2
                pl.BlockSpec((hidden, d_out), lambda i: (0, 0)),   # w3 (unpadded)
                pl.BlockSpec((1, d_out), lambda i: (0, 0)),        # b3 (unpadded)
            ],
            out_specs=pl.BlockSpec((bb, d_out), lambda i: (i, 0)),
        ),
        compiler_params=pltpu.CompilerParams(
            dimension_semantics=("parallel",),   # batch axis shards across TCs (v7x)
        ),
        cost_estimate=pl.CostEstimate(
            flops=flops,
            transcendentals=B * d_out,
            bytes_accessed=bytes_accessed,
        ),
    )(x, w1, b1, w2, b2, w3, b3)


def init_params(key, input_size, output_size, hidden=128):
    """Deterministic PyTorch-like init (uniform +-1/sqrt(fan_in))."""
    ks = jax.random.split(key, 6)

    def linear(kw, kb, fan_in, fan_out):
        bound = 1.0 / jnp.sqrt(jnp.float32(fan_in))
        w = jax.random.uniform(kw, (fan_in, fan_out), jnp.float32, -bound, bound)
        b = jax.random.uniform(kb, (1, fan_out), jnp.float32, -bound, bound)
        return w, b

    w1, b1 = linear(ks[0], ks[1], input_size, hidden)
    w2, b2 = linear(ks[2], ks[3], hidden, hidden)
    w3, b3 = linear(ks[4], ks[5], hidden, output_size)
    return w1, b1, w2, b2, w3, b3


def reference_forward(x, w1, b1, w2, b2, w3, b3):
    h1 = jnp.maximum(x @ w1 + b1, 0.0)
    h2 = jnp.maximum(h1 @ w2 + b2, 0.0)
    return jax.nn.sigmoid(h2 @ w3 + b3)


if __name__ == "__main__":
    key = jax.random.PRNGKey(0)
    k_x, k_x2, k_x3, k_p = jax.random.split(key, 4)

    input_size = 16
    output_size = 4
    params = init_params(k_p, input_size, output_size)

    # small batch (single grid step)
    batch = 8
    x = jax.random.normal(k_x, (batch, input_size), dtype=jnp.float32)
    out = jax.block_until_ready(nn_drought_stress_forward(x, *params))
    ref = reference_forward(x, *params)
    assert out.shape == (batch, output_size)
    # bf16 matmul operands + approx reciprocal -> loosened tolerance vs f32 reference
    assert jnp.allclose(out, ref, atol=2e-2, rtol=2e-2), "mismatch vs JAX reference"

    # ragged batch (partial block, no wrapper-side padding)
    batch2 = 10
    x2 = jax.random.normal(k_x2, (batch2, input_size), dtype=jnp.float32)
    out2 = jax.block_until_ready(nn_drought_stress_forward(x2, *params))
    ref2 = reference_forward(x2, *params)
    assert out2.shape == (batch2, output_size)
    assert jnp.allclose(out2, ref2, atol=2e-2, rtol=2e-2), "mismatch (ragged)"

    # larger batch: multi-step grid + partial last block
    batch3 = 300
    x3 = jax.random.normal(k_x3, (batch3, input_size), dtype=jnp.float32)
    out3 = jax.block_until_ready(nn_drought_stress_forward(x3, *params))
    ref3 = reference_forward(x3, *params)
    assert out3.shape == (batch3, output_size)
    assert jnp.allclose(out3, ref3, atol=2e-2, rtol=2e-2), "mismatch (multi-tile)"

    print("KERNEL_OK")
</pallas_src>

<mosaic_0001>
module attributes {stable_mosaic.version = 11 : i64} {
  func.func @_mlp_kernel(%arg0: i32, %arg1: memref<8x16xf32, #tpu.memory_space<vmem>>, %arg2: memref<16x128xf32, #tpu.memory_space<vmem>>, %arg3: memref<1x128xf32, #tpu.memory_space<vmem>>, %arg4: memref<128x128xf32, #tpu.memory_space<vmem>>, %arg5: memref<1x128xf32, #tpu.memory_space<vmem>>, %arg6: memref<128x4xf32, #tpu.memory_space<vmem>>, %arg7: memref<1x4xf32, #tpu.memory_space<vmem>>, %arg8: memref<8x4xf32, #tpu.memory_space<vmem>>) attributes {dimension_semantics = [#tpu.dimension_semantics<parallel>], iteration_bounds = array<i64: 1>, scalar_prefetch = 0 : i64, scratch_operands = 0 : i64, tpu.core_type = #tpu.core_type<tc>, window_params = [{transform_indices = @transform_0, window_bounds = array<i64: 8, 16>}, {pipeline_mode = #tpu.pipeline_mode<synchronous>, transform_indices = @transform_1, window_bounds = array<i64: 16, 128>}, {pipeline_mode = #tpu.pipeline_mode<synchronous>, transform_indices = @transform_2, window_bounds = array<i64: 1, 128>}, {pipeline_mode = #tpu.pipeline_mode<synchronous>, transform_indices = @transform_3, window_bounds = array<i64: 128, 128>}, {pipeline_mode = #tpu.pipeline_mode<synchronous>, transform_indices = @transform_4, window_bounds = array<i64: 1, 128>}, {pipeline_mode = #tpu.pipeline_mode<synchronous>, transform_indices = @transform_5, window_bounds = array<i64: 128, 4>}, {pipeline_mode = #tpu.pipeline_mode<synchronous>, transform_indices = @transform_6, window_bounds = array<i64: 1, 4>}, {transform_indices = @transform_7, window_bounds = array<i64: 8, 4>}]} {
    %c0 = arith.constant 0 : index
    %c0_0 = arith.constant 0 : index
    %0 = vector.load %arg1[%c0, %c0_0] : memref<8x16xf32, #tpu.memory_space<vmem>>, vector<8x16xf32>
    %1 = arith.truncf %0 : vector<8x16xf32> to vector<8x16xbf16>
    %c0_1 = arith.constant 0 : index
    %c0_2 = arith.constant 0 : index
    %2 = vector.load %arg2[%c0_1, %c0_2] : memref<16x128xf32, #tpu.memory_space<vmem>>, vector<16x128xf32>
    %3 = arith.truncf %2 : vector<16x128xf32> to vector<16x128xbf16>
    %cst = arith.constant dense<0.000000e+00> : vector<8x128xf32>
    %4 = tpu.matmul %1, %3, %cst {dimension_numbers = #tpu.dot_dimension_numbers<[1], [0], [0], [1], [0, 0, 1, 1], [], []>} : vector<8x16xbf16>, vector<16x128xbf16>, vector<8x128xf32> -> vector<8x128xf32>
    %c0_3 = arith.constant 0 : index
    %c0_4 = arith.constant 0 : index
    %5 = vector.load %arg3[%c0_3, %c0_4] : memref<1x128xf32, #tpu.memory_space<vmem>>, vector<1x128xf32>
    %6 = vector.broadcast %5 : vector<1x128xf32> to vector<8x128xf32>
    %7 = arith.addf %4, %6 : vector<8x128xf32>
    %cst_5 = arith.constant 0.000000e+00 : f32
    %8 = vector.broadcast %cst_5 : f32 to vector<8x128xf32>
    %9 = arith.maximumf %7, %8 : vector<8x128xf32>
    %10 = arith.truncf %9 : vector<8x128xf32> to vector<8x128xbf16>
    %c0_6 = arith.constant 0 : index
    %c0_7 = arith.constant 0 : index
    %11 = vector.load %arg4[%c0_6, %c0_7] : memref<128x128xf32, #tpu.memory_space<vmem>>, vector<128x128xf32>
    %12 = arith.truncf %11 : vector<128x128xf32> to vector<128x128xbf16>
    %cst_8 = arith.constant dense<0.000000e+00> : vector<8x128xf32>
    %13 = tpu.matmul %10, %12, %cst_8 {dimension_numbers = #tpu.dot_dimension_numbers<[1], [0], [0], [1], [0, 0, 1, 1], [], []>} : vector<8x128xbf16>, vector<128x128xbf16>, vector<8x128xf32> -> vector<8x128xf32>
    %c0_9 = arith.constant 0 : index
    %c0_10 = arith.constant 0 : index
    %14 = vector.load %arg5[%c0_9, %c0_10] : memref<1x128xf32, #tpu.memory_space<vmem>>, vector<1x128xf32>
    %15 = vector.broadcast %14 : vector<1x128xf32> to vector<8x128xf32>
    %16 = arith.addf %13, %15 : vector<8x128xf32>
    %cst_11 = arith.constant 0.000000e+00 : f32
    %17 = vector.broadcast %cst_11 : f32 to vector<8x128xf32>
    %18 = arith.maximumf %16, %17 : vector<8x128xf32>
    %19 = arith.truncf %18 : vector<8x128xf32> to vector<8x128xbf16>
    %c0_12 = arith.constant 0 : index
    %c0_13 = arith.constant 0 : index
    %20 = vector.load %arg6[%c0_12, %c0_13] : memref<128x4xf32, #tpu.memory_space<vmem>>, vector<128x4xf32>
    %21 = arith.truncf %20 : vector<128x4xf32> to vector<128x4xbf16>
    %cst_14 = arith.constant dense<0.000000e+00> : vector<8x4xf32>
    %22 = tpu.matmul %19, %21, %cst_14 {dimension_numbers = #tpu.dot_dimension_numbers<[1], [0], [0], [1], [0, 0, 1, 1], [], []>} : vector<8x128xbf16>, vector<128x4xbf16>, vector<8x4xf32> -> vector<8x4xf32>
    %c0_15 = arith.constant 0 : index
    %c0_16 = arith.constant 0 : index
    %23 = vector.load %arg7[%c0_15, %c0_16] : memref<1x4xf32, #tpu.memory_space<vmem>>, vector<1x4xf32>
    %24 = vector.broadcast %23 : vector<1x4xf32> to vector<8x4xf32>
    %25 = arith.addf %22, %24 : vector<8x4xf32>
    %cst_17 = arith.constant 0.000000e+00 : f32
    %26 = vector.broadcast %cst_17 : f32 to vector<8x4xf32>
    %27 = arith.subf %26, %25 : vector<8x4xf32>
    %28 = math.exp %27 : vector<8x4xf32>
    %cst_18 = arith.constant 1.000000e+00 : f32
    %29 = vector.broadcast %cst_18 : f32 to vector<8x4xf32>
    %30 = arith.addf %29, %28 : vector<8x4xf32>
    %31 = tpu.reciprocal %30 {approx = true} : vector<8x4xf32> -> vector<8x4xf32>
    %c0_19 = arith.constant 0 : index
    %c0_20 = arith.constant 0 : index
    %32 = vector.load %arg8[%c0_19, %c0_20] : memref<8x4xf32, #tpu.memory_space<vmem>>, vector<8x4xf32>
    tpu.vector_store %arg8[%c0_19, %c0_20], %31 {strides = array<i32>} : memref<8x4xf32, #tpu.memory_space<vmem>>, vector<8x4xf32>,
    return
  }
  func.func @transform_0(%arg0: i32) -> (i32, i32) {
    %c0_i32 = arith.constant 0 : i32
    %c0_i32_0 = arith.constant 0 : i32
    return %arg0, %c0_i32 : i32, i32
  }
  func.func @transform_1(%arg0: i32) -> (i32, i32) {
    %c0_i32 = arith.constant 0 : i32
    %c0_i32_0 = arith.constant 0 : i32
    %c0_i32_1 = arith.constant 0 : i32
    return %c0_i32, %c0_i32_0 : i32, i32
  }
  func.func @transform_2(%arg0: i32) -> (i32, i32) {
    %c0_i32 = arith.constant 0 : i32
    %c0_i32_0 = arith.constant 0 : i32
    %c0_i32_1 = arith.constant 0 : i32
    return %c0_i32, %c0_i32_0 : i32, i32
  }
  func.func @transform_3(%arg0: i32) -> (i32, i32) {
    %c0_i32 = arith.constant 0 : i32
    %c0_i32_0 = arith.constant 0 : i32
    %c0_i32_1 = arith.constant 0 : i32
    return %c0_i32, %c0_i32_0 : i32, i32
  }
  func.func @transform_4(%arg0: i32) -> (i32, i32) {
    %c0_i32 = arith.constant 0 : i32
    %c0_i32_0 = arith.constant 0 : i32
    %c0_i32_1 = arith.constant 0 : i32
    return %c0_i32, %c0_i32_0 : i32, i32
  }
  func.func @transform_5(%arg0: i32) -> (i32, i32) {
    %c0_i32 = arith.constant 0 : i32
    %c0_i32_0 = arith.constant 0 : i32
    %c0_i32_1 = arith.constant 0 : i32
    return %c0_i32, %c0_i32_0 : i32, i32
  }
  func.func @transform_6(%arg0: i32) -> (i32, i32) {
    %c0_i32 = arith.constant 0 : i32
    %c0_i32_0 = arith.constant 0 : i32
    %c0_i32_1 = arith.constant 0 : i32
    return %c0_i32, %c0_i32_0 : i32, i32
  }
  func.func @transform_7(%arg0: i32) -> (i32, i32) {
    %c0_i32 = arith.constant 0 : i32
    %c0_i32_0 = arith.constant 0 : i32
    return %arg0, %c0_i32 : i32, i32
  }
}

</mosaic_0001>

<llo_original>
// kernel: nn_drought_stress_forward.1
$region0: #{nn_drought_stress_forward.1}
  #allocation0 [shape = 'u32[]', space=smem, size = 0x4, offset = 0x4, fixed_abs, tag = 'smem constant byte address 0x4 - core index']
  #allocation1 [shape = 'u32[72,128]{1,0:T(1,128)}', space=vmem, size = 0x9000, scoped, tag = 'internal scratch']
  %s0 = inlined_call_operand.hbm [shape: f32[8,16], index: 0, kind: input, shape index: {}]
  %s1 = inlined_call_operand.hbm [shape: f32[16,128], index: 1, kind: input, shape index: {}]
  %s2 = inlined_call_operand.vmem [shape: f32[1,128], index: 2, kind: input, shape index: {}]
  %s3 = inlined_call_operand.vmem [shape: f32[128,128], index: 3, kind: input, shape index: {}]
  %s4 = inlined_call_operand.vmem [shape: f32[1,128], index: 4, kind: input, shape index: {}]
  %s5 = inlined_call_operand.vmem [shape: f32[128,4], index: 5, kind: input, shape index: {}]
  %s6 = inlined_call_operand.vmem [shape: f32[1,4], index: 6, kind: input, shape index: {}]
  %s7 = inlined_call_operand.vmem [shape: f32[8,4], index: 7, kind: output, shape index: {}]
  %s8 = sld [smem:[#allocation0]]
  $region46: #{nn_drought_stress_forward.1} parent=0
    _
  %s10 = ssub.s32 1, %s8
  %s11 = scalar_select 0, %s10, %s8
  $region1: #{nn_drought_stress_forward.1} parent=0
    #allocation2 [shape = 'u8[4096]{0}', space=vmem, size = 0x1000, scoped, tag = 'input window, operand 0, single buffered']
    #allocation3 [shape = 's32[1]{0}', space=sflag, size = 0x4, scoped, tag = 'scoped memory for nn_drought_stress_forward.1']
    #allocation4 [shape = 'u8[8192]{0}', space=vmem, size = 0x2000, scoped, tag = 'input window, operand 1, single buffered']
    #allocation5 [shape = 's32[1]{0}', space=sflag, size = 0x4, scoped, tag = 'scoped memory for nn_drought_stress_forward.1']
    %12 = vsyncpa [#allocation3], 0
    %13 = vsyncpa [#allocation5], 0
    // Predicated region
    $region2: #{nn_drought_stress_forward.1} parent=1 // pred_check
      _
    $region3: #{nn_drought_stress_forward.1} parent=1 // pred_check_branch
      %15 = sbr.rel (0) target = $region5
    $region4: #{nn_drought_stress_forward.1} parent=1 // pred_region
      %17 = vsyncadd [#allocation3], 0
      %s19 = sshll.u32 %s0, 4
      %s20 = int_to_ptr.hbm [resolvable:$true] %s19
      %s21 = sshll.u32 [#allocation2], 4
      %s22 = int_to_ptr.vmem [resolvable:$true] %s21
      %24 = dma.hbm_to_vmem [thread:$0]  %s20, 128, %s22, [#allocation3]
    $region5: #{nn_drought_stress_forward.1} parent=1 // pred_fallthru
      _
    // Predicated region
    $region6: #{nn_drought_stress_forward.1} parent=1 // pred_check
      _
    $region7: #{nn_drought_stress_forward.1} parent=1 // pred_check_branch
      %26 = sbr.rel (0) target = $region9
    $region8: #{nn_drought_stress_forward.1} parent=1 // pred_region
      %28 = vsyncadd [#allocation5], 0
      %s29 = sshll.u32 %s1, 4
      %s30 = int_to_ptr.hbm [resolvable:$true] %s29
      %s31 = sshll.u32 [#allocation4], 4
      %s32 = int_to_ptr.vmem [resolvable:$true] %s31
      %37 = dma.hbm_to_vmem [thread:$0]  %s30, 256, %s32, [#allocation5], 128, 128, 8
    $region9: #{nn_drought_stress_forward.1} parent=1 // pred_fallthru
      _
    // Predicated region
    $region10: #{nn_drought_stress_forward.1} parent=1 // pred_check
      _
    $region11: #{nn_drought_stress_forward.1} parent=1 // pred_check_branch
      %39 = sbr.rel (0) target = $region13
    $region12: #{nn_drought_stress_forward.1} parent=1 // pred_region
      _
    $region13: #{nn_drought_stress_forward.1} parent=1 // pred_fallthru
      _
    // Predicated region
    $region14: #{nn_drought_stress_forward.1} parent=1 // pred_check
      _
    $region15: #{nn_drought_stress_forward.1} parent=1 // pred_check_branch
      %41 = sbr.rel (0) target = $region17
    $region16: #{nn_drought_stress_forward.1} parent=1 // pred_region
      _
    $region17: #{nn_drought_stress_forward.1} parent=1 // pred_fallthru
      _
    // Predicated region
    $region18: #{nn_drought_stress_forward.1} parent=1 // pred_check
      _
    $region19: #{nn_drought_stress_forward.1} parent=1 // pred_check_branch
      %43 = sbr.rel (0) target = $region21
    $region20: #{nn_drought_stress_forward.1} parent=1 // pred_region
      _
    $region21: #{nn_drought_stress_forward.1} parent=1 // pred_fallthru
      _
    // Predicated region
    $region22: #{nn_drought_stress_forward.1} parent=1 // pred_check
      _
    $region23: #{nn_drought_stress_forward.1} parent=1 // pred_check_branch
      %45 = sbr.rel (0) target = $region25
    $region24: #{nn_drought_stress_forward.1} parent=1 // pred_region
      _
    $region25: #{nn_drought_stress_forward.1} parent=1 // pred_fallthru
      _
    // Predicated region
    $region26: #{nn_drought_stress_forward.1} parent=1 // pred_check
      _
    $region27: #{nn_drought_stress_forward.1} parent=1 // pred_check_branch
      %47 = sbr.rel (0) target = $region29
    $region28: #{nn_drought_stress_forward.1} parent=1 // pred_region
      _
    $region29: #{nn_drought_stress_forward.1} parent=1 // pred_fallthru
      _
    // Predicated region
    $region30: #{nn_drought_stress_forward.1} parent=1 // pred_check
      _
    $region31: #{nn_drought_stress_forward.1} parent=1 // pred_check_branch
      %49 = sbr.rel (0) target = $region33
    $region32: #{nn_drought_stress_forward.1} parent=1 // pred_region
      %51 = dma.done [#allocation3], 128
    $region33: #{nn_drought_stress_forward.1} parent=1 // pred_fallthru
      _
    // Predicated region
    $region34: #{nn_drought_stress_forward.1} parent=1 // pred_check
      _
    $region35: #{nn_drought_stress_forward.1} parent=1 // pred_check_branch
      %53 = sbr.rel (0) target = $region37
    $region36: #{nn_drought_stress_forward.1} parent=1 // pred_region
      %55 = dma.done [#allocation5], 256
    $region37: #{nn_drought_stress_forward.1} parent=1 // pred_fallthru
      _
    %v57 = vld [vmem:[#allocation2] sm:$0xff]
    %v58 = vpack.c.bf16 %v57, %v57
    %v59 = vld [vmem:[#allocation4] sm:$0xff]
    %v60 = vld [vmem:[#allocation4 + $0x8] sm:$0xff]
    %v61 = vpack.c.bf16 %v60, %v59
    %v62 = vld [vmem:[%s2] sm:$0x1]
    %v64 = vperm.slane %v62, 0
    %vm66 = vcmask 130048
    %v68 = vsel %vm66, %v58, 0
    %70 = vmatpush.bf16.msra.mxu0 0
    %71 = vmatpush.bf16.msra.mxu0 0
    %72 = vmatpush.bf16.msra.mxu0 0
    %73 = vmatpush.bf16.msra.mxu0 0
    %74 = vmatpush.bf16.msra.mxu0 0
    %75 = vmatpush.bf16.msra.mxu0 0
    %76 = vmatpush.bf16.msra.mxu0 0
    %77 = vmatpush.bf16.msra.mxu0 %v61
    %78 = vmatmul.bf16.gmra.mxu0 %v68
    %v79 = vpop.f32.mrf.mxu0
    %v80 = vadd.f32 %v64, %v79
    %v81 = vpop.f32.mrf.mxu0
    %82 = vdwg.mxu0
    %v83 = vmax.f32 %v80, 0.0
    %v84 = vpack.c.bf16 %v83, %v83
    %v85 = vld [vmem:[%s3] sm:$0xff]
    %v86 = vld [vmem:[%s3 + $0x8] sm:$0xff]
    %v87 = vld [vmem:[%s3 + $0x10] sm:$0xff]
    %v88 = vld [vmem:[%s3 + $0x18] sm:$0xff]
    %v89 = vld [vmem:[%s3 + $0x20] sm:$0xff]
    %v90 = vld [vmem:[%s3 + $0x28] sm:$0xff]
    %v91 = vld [vmem:[%s3 + $0x30] sm:$0xff]
    %v92 = vld [vmem:[%s3 + $0x38] sm:$0xff]
    %v93 = vld [vmem:[%s3 + $0x40] sm:$0xff]
    %v94 = vld [vmem:[%s3 + $0x48] sm:$0xff]
    %v95 = vld [vmem:[%s3 + $0x50] sm:$0xff]
    %v96 = vld [vmem:[%s3 + $0x58] sm:$0xff]
    %v97 = vld [vmem:[%s3 + $0x60] sm:$0xff]
    %v98 = vld [vmem:[%s3 + $0x68] sm:$0xff]
    %v99 = vld [vmem:[%s3 + $0x70] sm:$0xff]
    %v100 = vld [vmem:[%s3 + $0x78] sm:$0xff]
    %v101 = vpack.c.bf16 %v86, %v85
    %v102 = vpack.c.bf16 %v88, %v87
    %v103 = vpack.c.bf16 %v90, %v89
    %v104 = vpack.c.bf16 %v92, %v91
    %v105 = vpack.c.bf16 %v94, %v93
    %v106 = vpack.c.bf16 %v96, %v95
    %v107 = vpack.c.bf16 %v98, %v97
    %v108 = vpack.c.bf16 %v100, %v99
    %v109 = vld [vmem:[%s4] sm:$0x1]
    %v111 = vperm.slane %v109, 0
    %113 = vmatpush.bf16.msra.mxu0 %v108
    %114 = vmatpush.bf16.msra.mxu0 %v107
    %115 = vmatpush.bf16.msra.mxu0 %v106
    %116 = vmatpush.bf16.msra.mxu0 %v105
    %117 = vmatpush.bf16.msra.mxu0 %v104
    %118 = vmatpush.bf16.msra.mxu0 %v103
    %119 = vmatpush.bf16.msra.mxu0 %v102
    %120 = vmatpush.bf16.msra.mxu0 %v101
    %121 = vmatmul.bf16.gmra.mxu0 %v84
    %v122 = vpop.f32.mrf.mxu0
    %v123 = vadd.f32 %v111, %v122
    %v124 = vpop.f32.mrf.mxu0
    %125 = vdwg.mxu0
    %v126 = vmax.f32 %v123, 0.0
    %v127 = vpack.c.bf16 %v126, %v126
    %v128 = vld [vmem:[%s5] sm:$0xff]
    %v129 = vld [vmem:[%s5 + $0x8] sm:$0xff]
    %v130 = vld [vmem:[%s5 + $0x10] sm:$0xff]
    %v131 = vld [vmem:[%s5 + $0x18] sm:$0xff]
    %v132 = vld [vmem:[%s5 + $0x20] sm:$0xff]
    %v133 = vld [vmem:[%s5 + $0x28] sm:$0xff]
    %v134 = vld [vmem:[%s5 + $0x30] sm:$0xff]
    %v135 = vld [vmem:[%s5 + $0x38] sm:$0xff]
    %v136 = vld [vmem:[%s5 + $0x40] sm:$0xff]
    %v137 = vld [vmem:[%s5 + $0x48] sm:$0xff]
    %v138 = vld [vmem:[%s5 + $0x50] sm:$0xff]
    %v139 = vld [vmem:[%s5 + $0x58] sm:$0xff]
    %v140 = vld [vmem:[%s5 + $0x60] sm:$0xff]
    %v141 = vld [vmem:[%s5 + $0x68] sm:$0xff]
    %v142 = vld [vmem:[%s5 + $0x70] sm:$0xff]
    %v143 = vld [vmem:[%s5 + $0x78] sm:$0xff]
    %v144 = vpack.c.bf16 %v129, %v128
    %v145 = vpack.c.bf16 %v131, %v130
    %v146 = vpack.c.bf16 %v133, %v132
    %v147 = vpack.c.bf16 %v135, %v134
    %v148 = vpack.c.bf16 %v137, %v136
    %v149 = vpack.c.bf16 %v139, %v138
    %v150 = vpack.c.bf16 %v141, %v140
    %v151 = vpack.c.bf16 %v143, %v142
    %v152 = vld [vmem:[%s6] sm:$0x1]
    %v154 = vperm.slane %v152, 0
    %156 = vmatpush.bf16.msra.mxu0 %v151
    %157 = vmatpush.bf16.msra.mxu0 %v150
    %158 = vmatpush.bf16.msra.mxu0 %v149
    %159 = vmatpush.bf16.msra.mxu0 %v148
    %160 = vmatpush.bf16.msra.mxu0 %v147
    %161 = vmatpush.bf16.msra.mxu0 %v146
    %162 = vmatpush.bf16.msra.mxu0 %v145
    %163 = vmatpush.bf16.msra.mxu0 %v144
    %164 = vmatmul.bf16.gmra.mxu0 %v127
    %v165 = vpop.f32.mrf.mxu0
    %v166 = vadd.f32 %v154, %v165
    %v167 = vpop.f32.mrf.mxu0
    %168 = vdwg.mxu0
    %v169 = vsub.f32 0.0, %v166
    %v170 = vmul.f32 %v169, 1.442695
    %v171 = vpow.pop %v170
    %v172 = vadd.f32 %v171, 1.0
    %v173 = vrcp.pop %v172
    %vm174 = vcmask 31744
    %175 = vst.msk [vmem:[%s7] sm:$0xff] %vm174, %v173
    // Predicated region
    $region38: #{nn_drought_stress_forward.1} parent=1 // pred_check
      _
    $region39: #{nn_drought_stress_forward.1} parent=1 // pred_check_branch
      %177 = sbr.rel (0) target = $region41
    $region40: #{nn_drought_stress_forward.1} parent=1 // pred_region
      _
    $region41: #{nn_drought_stress_forward.1} parent=1 // pred_fallthru
      _
    // Predicated region
    $region42: #{nn_drought_stress_forward.1} parent=1 // pred_check
      _
    $region43: #{nn_drought_stress_forward.1} parent=1 // pred_check_branch
      %179 = sbr.rel (0) target = $region45
    $region44: #{nn_drought_stress_forward.1} parent=1 // pred_region
      _
    $region45: #{nn_drought_stress_forward.1} parent=1 // pred_fallthru
      _
    %180 = vsyncpa [#allocation3], 1
    %181 = vsyncpa [#allocation5], 1

</llo_original>
